<compile_context>
chip_gen: v7x
topology: tpu7x:2x2x1
jax: 0.10.0
libtpu: 0.0.40
codegen_flags: <defaults>
</compile_context>

<pallas_src>
import jax
import jax.numpy as jnp
from jax.experimental import pallas as pl
from jax.experimental.pallas import tpu as pltpu


def attention_layer_kernel(x_ref, w_ref, o_ref):
    # x_ref block: (Bt, S, H), w_ref: (H, K), o_ref block: (Bt, K, H)
    bt, s, h = x_ref.shape
    k = w_ref.shape[1]

    x = x_ref[...]          # (Bt, S, H), native dtype (MXU accumulates in f32)
    w = w_ref[...]          # (H, K)

    # attention_score = x @ W, folded into one 2D MXU matmul: (Bt*S, H) @ (H, K).
    # The (Bt, S) -> (Bt*S) merge keeps the lane (H) dim untouched, so it is layout-free.
    scores = jnp.dot(
        x.reshape(bt * s, h), w, preferred_element_type=jnp.float32
    ).reshape(bt, s, k)                                   # (Bt, S, K) f32

    # softmax over the sequence dim (PyTorch dim=1), numerically stable, all in f32
    m = jnp.max(scores, axis=1, keepdims=True)            # (Bt, 1, K)
    e = jnp.exp(scores - m)                                # (Bt, S, K)
    denom = jnp.sum(e, axis=1, keepdims=True)              # (Bt, 1, K)
    sm = e * pl.reciprocal(denom, approx=False)            # (Bt, S, K)

    # condensed[b, k, h] = sum_s sm[b, s, k] * x[b, s, h]
    # Batched contraction over S expressed via dimension_numbers (no explicit transpose).
    out = jax.lax.dot_general(
        sm.astype(x.dtype), x,
        dimension_numbers=(((1,), (1,)), ((0,), (0,))),
        preferred_element_type=jnp.float32,
    )                                                     # (Bt, K, H) f32

    o_ref[...] = out.astype(o_ref.dtype)


def _pick_block_b(B, S, H, K, itemsize):
    """Largest divisor of B that fits a conservative VMEM budget and keeps >=2 grid steps."""
    # double-buffered input block + double-buffered output block + f32 temporaries, per batch row
    per_b = 2 * S * H * itemsize + 2 * K * H * 4 + 2 * S * K * 4 + K * H * 4
    budget = 8 * 1024 * 1024      # conservative: fits v5e 16 MiB scoped & v7x 64 MiB physical
    cap = max(1, budget // per_b)
    cap = min(cap, 64)
    if B >= 2:
        # keep at least 2 parallel grid steps so v7x's two TensorCores both get work
        cap = min(cap, max(1, B // 2))
    best = 1
    for d in range(1, min(B, cap) + 1):
        if B % d == 0:
            best = d
    return best


def attention_layer(x_in, attention_w, *, block_b=None):
    """x_in: (B, S, H), attention_w: (H, K) -> (B, K, H)."""
    B, S, H = x_in.shape
    Hw, K = attention_w.shape
    assert Hw == H

    x_itemsize = jnp.dtype(x_in.dtype).itemsize
    w_itemsize = jnp.dtype(attention_w.dtype).itemsize

    if block_b is None:
        block_b = _pick_block_b(B, S, H, K, x_itemsize)
    assert B % block_b == 0, "block_b must divide B"
    num_blocks = B // block_b

    cost = pl.CostEstimate(
        flops=4 * B * S * H * K,                 # two (B*S, H, K)-sized matmuls
        transcendentals=B * S * K,               # exp in the softmax
        bytes_accessed=B * S * H * x_itemsize + H * K * w_itemsize + B * K * H * x_itemsize,
    )

    return pl.pallas_call(
        attention_layer_kernel,
        out_shape=jax.ShapeDtypeStruct((B, K, H), x_in.dtype),
        grid_spec=pltpu.PrefetchScalarGridSpec(
            num_scalar_prefetch=0,
            grid=(num_blocks,),
            in_specs=[
                pl.BlockSpec((block_b, S, H), lambda b: (b, 0, 0)),
                pl.BlockSpec((H, K), lambda b: (0, 0)),
            ],
            out_specs=pl.BlockSpec((block_b, K, H), lambda b: (b, 0, 0)),
        ),
        compiler_params=pltpu.CompilerParams(
            dimension_semantics=("parallel",),
        ),
        cost_estimate=cost,
    )(x_in, attention_w)


def reference(x_in, attention_w):
    # Pure-JAX reference mirroring the PyTorch forward exactly.
    scores = jnp.einsum("bsh,hk->bsk", x_in, attention_w)
    sm = jax.nn.softmax(scores, axis=1)                 # softmax over dim=1 (S)
    scored = x_in[:, :, None, :] * sm[:, :, :, None]    # (B, S, K, H)
    return jnp.sum(scored, axis=1)                      # (B, K, H)


if __name__ == "__main__":
    B, S, H, K = 2, 8, 32, 10   # attention_size = H = 32

    key = jax.random.PRNGKey(0)
    kx, kw = jax.random.split(key)

    x_in = jax.random.normal(kx, (B, S, H), dtype=jnp.float32)

    # xavier_normal init for the (H, K) attention parameter: std = sqrt(2/(fan_in+fan_out))
    xavier_std = (2.0 / (H + K)) ** 0.5
    attention_w = xavier_std * jax.random.normal(kw, (H, K), dtype=jnp.float32)

    out = attention_layer(x_in, attention_w)
    out = jax.block_until_ready(out)

    ref = reference(x_in, attention_w)
    assert out.shape == (B, K, H)
    assert jnp.allclose(out, ref, atol=1e-5, rtol=1e-5), "mismatch vs reference"

    print("KERNEL_OK")
</pallas_src>

<mosaic_0001>
module attributes {stable_mosaic.version = 11 : i64} {
  func.func @attention_layer_kernel(%arg0: i32, %arg1: memref<1x8x32xf32, #tpu.memory_space<vmem>>, %arg2: memref<32x10xf32, #tpu.memory_space<vmem>>, %arg3: memref<1x10x32xf32, #tpu.memory_space<vmem>>) attributes {dimension_semantics = [#tpu.dimension_semantics<parallel>], iteration_bounds = array<i64: 2>, scalar_prefetch = 0 : i64, scratch_operands = 0 : i64, tpu.core_type = #tpu.core_type<tc>, window_params = [{transform_indices = @transform_0, window_bounds = array<i64: 1, 8, 32>}, {pipeline_mode = #tpu.pipeline_mode<synchronous>, transform_indices = @transform_1, window_bounds = array<i64: 32, 10>}, {transform_indices = @transform_2, window_bounds = array<i64: 1, 10, 32>}]} {
    %c0 = arith.constant 0 : index
    %c0_0 = arith.constant 0 : index
    %c0_1 = arith.constant 0 : index
    %0 = vector.load %arg1[%c0, %c0_0, %c0_1] : memref<1x8x32xf32, #tpu.memory_space<vmem>>, vector<1x8x32xf32>
    %c0_2 = arith.constant 0 : index
    %c0_3 = arith.constant 0 : index
    %1 = vector.load %arg2[%c0_2, %c0_3] : memref<32x10xf32, #tpu.memory_space<vmem>>, vector<32x10xf32>
    %2 = vector.shape_cast %0 : vector<1x8x32xf32> to vector<8x32xf32>
    %cst = arith.constant dense<0.000000e+00> : vector<8x10xf32>
    %3 = tpu.matmul %2, %1, %cst {dimension_numbers = #tpu.dot_dimension_numbers<[1], [0], [0], [1], [0, 0, 1, 1], [], []>} : vector<8x32xf32>, vector<32x10xf32>, vector<8x10xf32> -> vector<8x10xf32>
    %4 = vector.shape_cast %3 : vector<8x10xf32> to vector<1x8x10xf32>
    %cst_4 = arith.constant dense<0xFF800000> : vector<1x10xf32>
    %5 = vector.multi_reduction <maximumf>, %4, %cst_4 [1] : vector<1x8x10xf32> to vector<1x10xf32>
    %6 = vector.shape_cast %5 : vector<1x10xf32> to vector<1x1x10xf32>
    %7 = vector.broadcast %6 : vector<1x1x10xf32> to vector<1x8x10xf32>
    %8 = arith.subf %4, %7 : vector<1x8x10xf32>
    %9 = math.exp %8 : vector<1x8x10xf32>
    %cst_5 = arith.constant dense<0.000000e+00> : vector<1x10xf32>
    %10 = vector.multi_reduction <add>, %9, %cst_5 [1] : vector<1x8x10xf32> to vector<1x10xf32>
    %11 = vector.shape_cast %10 : vector<1x10xf32> to vector<1x1x10xf32>
    %12 = tpu.reciprocal %11 : vector<1x1x10xf32> -> vector<1x1x10xf32>
    %13 = vector.broadcast %12 : vector<1x1x10xf32> to vector<1x8x10xf32>
    %14 = arith.mulf %9, %13 : vector<1x8x10xf32>
    %cst_6 = arith.constant dense<0.000000e+00> : vector<1x10x32xf32>
    %15 = tpu.matmul %14, %0, %cst_6 {dimension_numbers = #tpu.dot_dimension_numbers<[1], [1], [2], [2], [0, 0, 0, 2, 1, 2], [0], [0]>} : vector<1x8x10xf32>, vector<1x8x32xf32>, vector<1x10x32xf32> -> vector<1x10x32xf32>
    %c0_7 = arith.constant 0 : index
    %c0_8 = arith.constant 0 : index
    %c0_9 = arith.constant 0 : index
    %16 = vector.load %arg3[%c0_7, %c0_8, %c0_9] : memref<1x10x32xf32, #tpu.memory_space<vmem>>, vector<1x10x32xf32>
    tpu.vector_store %arg3[%c0_7, %c0_8, %c0_9], %15 {strides = array<i32>} : memref<1x10x32xf32, #tpu.memory_space<vmem>>, vector<1x10x32xf32>,
    return
  }
  func.func @transform_0(%arg0: i32) -> (i32, i32, i32) {
    %c0_i32 = arith.constant 0 : i32
    %c0_i32_0 = arith.constant 0 : i32
    %c0_i32_1 = arith.constant 0 : i32
    return %arg0, %c0_i32, %c0_i32_0 : i32, i32, i32
  }
  func.func @transform_1(%arg0: i32) -> (i32, i32) {
    %c0_i32 = arith.constant 0 : i32
    %c0_i32_0 = arith.constant 0 : i32
    %c0_i32_1 = arith.constant 0 : i32
    return %c0_i32, %c0_i32_0 : i32, i32
  }
  func.func @transform_2(%arg0: i32) -> (i32, i32, i32) {
    %c0_i32 = arith.constant 0 : i32
    %c0_i32_0 = arith.constant 0 : i32
    %c0_i32_1 = arith.constant 0 : i32
    return %arg0, %c0_i32, %c0_i32_0 : i32, i32, i32
  }
}

</mosaic_0001>

<llo_original>
// kernel: tpu_custom_call.1
$region0: #{tpu_custom_call.1}
  #allocation0 [shape = 'u32[]', space=smem, size = 0x4, offset = 0x4, fixed_abs, tag = 'smem constant byte address 0x4 - core index']
  #allocation1 [shape = 'u32[144,128]{1,0:T(1,128)}', space=vmem, size = 0x12000, scoped, tag = 'internal scratch']
  %s0 = inlined_call_operand.vmem [shape: f32[2,8,32], index: 0, kind: input, shape index: {}]
  %s1 = inlined_call_operand.vmem [shape: f32[32,10], index: 1, kind: input, shape index: {}]
  %s2 = inlined_call_operand.vmem [shape: f32[2,10,32], index: 2, kind: output, shape index: {}]
  %s3 = sld [smem:[#allocation0]]
  $region41: #{tpu_custom_call.1} parent=0
    _
  %s5 = ssub.s32 1, %s3
  %s6 = scalar_select 0, %s5, %s3
  loop: start=0, step=1, limit=4
  $region2: #{tpu_custom_call.1} parent=0 // loop_pre_header
    _
  $region3: #{tpu_custom_call.1} parent=0 // loop_header
    %s8 = sphi 0, %s12
    %p9 = scmp.ge.s32.totalorder %s8, 4
    %s18 = sphi 0, %s20
    %s21 = sphi 0, %s18
    %s22 = sphi 0, %s21
    %s38 = sphi 0, %s22
    %s42 = sphi 0, %s42
    %s44 = sphi 0, %s42
    %s45 = sphi 0, %s44
    %s59 = sphi 0, %s45
    %s65 = sphi 0, %s67
    %s68 = sphi 0, %s65
    %s69 = sphi 0, %s68
    %s85 = sphi 0, %s69
  $region4: #{tpu_custom_call.1} parent=0 // loop_header_branch
    %11 = sbr.rel (%p9) target = $region8
  $region5: #{tpu_custom_call.1} parent=0 // loop_body
    %s13 = ssub.s32 %s8, 1
    %s14 = ssub.s32 %s8, 2
    %s15 = sadd.s32 %s8, 1
    %s16 = ssub.s32 %s8, %s15
    %p17 = scmp.eq.s32.totalorder %s16, 0
    %s19 = sadd.s32 %s18, 1
    %s20 = scalar_select %p17, %s18, %s19
    %p23 = pneg %p17
    %p24 = scmp.eq.s32.totalorder %s8, 1
    %p25 = por %p23, %p24
    %p26 = scmp.ne.s32.totalorder %s18, %s21
    %p27 = scmp.eq.s32.totalorder %s8, 0
    %p28 = por %p26, %p27
    %p29 = scmp.ne.s32.totalorder %s18, %s21
    %p30 = scmp.eq.s32.totalorder %s13, 1
    %p31 = por %p29, %p30
    %p32 = scmp.ne.s32.totalorder %s21, %s22
    %p33 = scmp.eq.s32.totalorder %s13, 0
    %p34 = por %p32, %p33
    %p35 = scmp.ne.s32.totalorder %s21, %s22
    %p36 = scmp.eq.s32.totalorder %s14, 1
    %p37 = por %p35, %p36
    %p39 = scmp.ne.s32.totalorder %s22, %s38
    %p40 = scmp.eq.s32.totalorder %s14, 0
    %p41 = por %p39, %p40
    %s43 = sadd.s32 %s42, 1
    %p46 = scmp.eq.s32.totalorder %s8, 1
    %p47 = scmp.ne.s32.totalorder %s42, %s44
    %p48 = scmp.eq.s32.totalorder %s8, 0
    %p49 = por %p47, %p48
    %p50 = scmp.ne.s32.totalorder %s42, %s44
    %p51 = scmp.eq.s32.totalorder %s13, 1
    %p52 = por %p50, %p51
    %p53 = scmp.ne.s32.totalorder %s44, %s45
    %p54 = scmp.eq.s32.totalorder %s13, 0
    %p55 = por %p53, %p54
    %p56 = scmp.ne.s32.totalorder %s44, %s45
    %p57 = scmp.eq.s32.totalorder %s14, 1
    %p58 = por %p56, %p57
    %p60 = scmp.ne.s32.totalorder %s45, %s59
    %p61 = scmp.eq.s32.totalorder %s14, 0
    %p62 = por %p60, %p61
    %s63 = ssub.s32 %s8, %s15
    %p64 = scmp.eq.s32.totalorder %s63, 0
    %s66 = sadd.s32 %s65, 1
    %s67 = scalar_select %p64, %s65, %s66
    %p70 = pneg %p64
    %p71 = scmp.eq.s32.totalorder %s8, 1
    %p72 = por %p70, %p71
    %p73 = scmp.ne.s32.totalorder %s65, %s68
    %p74 = scmp.eq.s32.totalorder %s8, 0
    %p75 = por %p73, %p74
    %p76 = scmp.ne.s32.totalorder %s65, %s68
    %p77 = scmp.eq.s32.totalorder %s13, 1
    %p78 = por %p76, %p77
    %p79 = scmp.ne.s32.totalorder %s68, %s69
    %p80 = scmp.eq.s32.totalorder %s13, 0
    %p81 = por %p79, %p80
    %p82 = scmp.ne.s32.totalorder %s68, %s69
    %p83 = scmp.eq.s32.totalorder %s14, 1
    %p84 = por %p82, %p83
    %p86 = scmp.ne.s32.totalorder %s69, %s85
    %p87 = scmp.eq.s32.totalorder %s14, 0
    %p88 = por %p86, %p87
    %p89 = scmp.le.s32.totalorder 1, %s8
    %p90 = scmp.lt.s32.totalorder %s8, 3
    %p91 = pnand %p89, %p90
    %p92 = pneg %p91
    // Predicated region
    $region9: #{tpu_custom_call.1} parent=5 // pred_check
      _
    $region10: #{tpu_custom_call.1} parent=5 // pred_check_branch
      %94 = sbr.rel (%p91) target = $region12
    $region11: #{tpu_custom_call.1} parent=5 // pred_region
      %s95 = ssub.s32 %s8, 1
      // Predicated region
      $region13: #{tpu_custom_call.1} parent=11 // pred_check
        %p96 = pneg %p55
      $region14: #{tpu_custom_call.1} parent=11 // pred_check_branch
        %98 = sbr.rel (%p96) target = $region16
      $region15: #{tpu_custom_call.1} parent=11 // pred_region
        _
      $region16: #{tpu_custom_call.1} parent=11 // pred_fallthru
        _
    $region12: #{tpu_custom_call.1} parent=5 // pred_fallthru
      _
    %p99 = scmp.lt.s32.totalorder %s8, 2
    // Predicated region
    $region17: #{tpu_custom_call.1} parent=5 // pred_check
      %p100 = pneg %p99
    $region18: #{tpu_custom_call.1} parent=5 // pred_check_branch
      %102 = sbr.rel (%p100) target = $region20
    $region19: #{tpu_custom_call.1} parent=5 // pred_region
      // Predicated region
      $region21: #{tpu_custom_call.1} parent=19 // pred_check
        %p103 = pneg %p28
      $region22: #{tpu_custom_call.1} parent=19 // pred_check_branch
        %105 = sbr.rel (%p103) target = $region24
      $region23: #{tpu_custom_call.1} parent=19 // pred_region
        %p106 = scmp.lt.s32.totalorder %s8, 1
        %s107 = scalar_select %p106, %s8, 1
        %s108 = smul.addr %s107, 8
        %s109 = scalar_lea.vmem %s0, %s108
      $region24: #{tpu_custom_call.1} parent=19 // pred_fallthru
        _
    $region20: #{tpu_custom_call.1} parent=5 // pred_fallthru
      _
    %p110 = scmp.le.s32.totalorder 1, %s8
    %p111 = scmp.lt.s32.totalorder %s8, 3
    %p112 = pnand %p110, %p111
    %p113 = pneg %p112
    // Predicated region
    $region25: #{tpu_custom_call.1} parent=5 // pred_check
      _
    $region26: #{tpu_custom_call.1} parent=5 // pred_check_branch
      %115 = sbr.rel (%p112) target = $region28
    $region27: #{tpu_custom_call.1} parent=5 // pred_region
      %s116 = ssub.s32 %s8, 1
      %p117 = scmp.lt.s32.totalorder %s13, 1
      %s118 = scalar_select %p117, %s13, 1
      %s119 = smul.addr %s118, 8
      %s120 = scalar_lea.vmem %s0, %s119
      %p121 = pneg %p34
      %p122 = pneg %p31
      %p123 = pneg %p55
      %p124 = pneg %p52
      %p125 = pneg %p81
      %p126 = pneg %p78
      %p127 = scmp.lt.s32.totalorder %s13, 1
      %s128 = scalar_select %p127, %s13, 1
      %s129 = smul.addr %s128, 2
      %s130 = smul.addr %s129, 8
      %s131 = scalar_lea.vmem %s2, %s130
      %p132 = scmp.lt.s32.totalorder %s13, 1
      %s133 = scalar_select %p132, %s13, 1
      %s134 = smul.addr %s133, 8
      %s135 = scalar_lea.vmem %s0, %s134
      %p136 = scmp.lt.s32.totalorder %s13, 1
      %s137 = scalar_select %p136, %s13, 1
      %s138 = smul.addr %s137, 2
      %s139 = smul.addr %s138, 8
      %s140 = scalar_lea.vmem %s2, %s139
      %v141 = vld [vmem:[%s135] sm:$0xff]
      %v142 = vld [vmem:[%s1] sm:$0xff]
      %v143 = vld [vmem:[%s1 + $0x8] sm:$0xff]
      %v144 = vld [vmem:[%s1 + $0x10] sm:$0xff]
      %v145 = vld [vmem:[%s1 + $0x18] sm:$0xff]
      %vm146 = vcmask 261120
      %v148 = vsel %vm146, %v141, 0
      %150 = vmatprep.subr.mxu0 0.0
      %151 = vmatpush1.msra.mxu0 %v142
      %152 = vmatprep.subr.mxu0 0.0
      %153 = vmatpush1.msra.mxu0 %v143
      %154 = vmatprep.subr.mxu0 0.0
      %155 = vmatpush1.msra.mxu0 %v144
      %156 = vmatprep.subr.mxu0 0.0
      %157 = vmatpush1.msra.mxu0 %v145
      %158 = vmatprep.subr.mxu0 0.0
      %159 = vmatpush1.msra.mxu0 0.0
      %160 = vmatprep.subr.mxu0 0.0
      %161 = vmatpush1.msra.mxu0 0.0
      %162 = vmatprep.subr.mxu0 0.0
      %163 = vmatpush1.msra.mxu0 0.0
      %164 = vmatprep.subr.mxu0 0.0
      %165 = vmatpush1.msra.mxu0 0.0
      %166 = vmatprep.subr.mxu0 0.0
      %167 = vmatpush1.msra.mxu0 0.0
      %168 = vmatprep.subr.mxu0 0.0
      %169 = vmatpush1.msra.mxu0 0.0
      %170 = vmatprep.subr.mxu0 0.0
      %171 = vmatpush1.msra.mxu0 0.0
      %172 = vmatprep.subr.mxu0 0.0
      %173 = vmatpush1.msra.mxu0 0.0
      %174 = vmatprep.subr.mxu0 0.0
      %175 = vmatpush1.msra.mxu0 0.0
      %176 = vmatprep.subr.mxu0 0.0
      %177 = vmatpush1.msra.mxu0 0.0
      %178 = vmatprep.subr.mxu0 0.0
      %179 = vmatpush1.msra.mxu0 0.0
      %180 = vmatprep.subr.mxu0 0.0
      %181 = vmatpush1.msra.mxu0 0.0
      %182 = vmatprep.subr.mxu0 0.0
      %183 = vmatpush1.msra.mxu0 0.0
      %184 = vmatprep.subr.mxu0 0.0
      %185 = vmatpush1.msra.mxu0 0.0
      %186 = vmatprep.subr.mxu0 0.0
      %187 = vmatpush1.msra.mxu0 0.0
      %188 = vmatprep.subr.mxu0 0.0
      %189 = vmatpush1.msra.mxu0 0.0
      %190 = vmatprep.subr.mxu0 0.0
      %191 = vmatpush1.msra.mxu0 0.0
      %192 = vmatprep.subr.mxu0 0.0
      %193 = vmatpush1.msra.mxu0 0.0
      %194 = vmatprep.subr.mxu0 0.0
      %195 = vmatpush1.msra.mxu0 0.0
      %196 = vmatprep.subr.mxu0 0.0
      %197 = vmatpush1.msra.mxu0 0.0
      %198 = vmatprep.subr.mxu0 0.0
      %199 = vmatpush1.msra.mxu0 0.0
      %200 = vmatprep.subr.mxu0 0.0
      %201 = vmatpush1.msra.mxu0 0.0
      %202 = vmatprep.subr.mxu0 0.0
      %203 = vmatpush1.msra.mxu0 0.0
      %204 = vmatprep.subr.mxu0 0.0
      %205 = vmatpush1.msra.mxu0 0.0
      %206 = vmatprep.subr.mxu0 0.0
      %207 = vmatpush1.msra.mxu0 0.0
      %208 = vmatprep.subr.mxu0 0.0
      %209 = vmatpush1.msra.mxu0 0.0
      %210 = vmatprep.subr.mxu0 0.0
      %211 = vmatpush1.msra.mxu0 0.0
      %212 = vmatprep.subr.mxu0 0.0
      %213 = vmatpush1.msra.mxu0 0.0
      %214 = vmatprep.mubr.f32.mxu0 0.0
      %215 = vmatmul.mubr.f32.gmra.mrb[0].mxu0 %v148
      %v216 = vpop.f32.mrb[0].mxu0
      %v217 = vadd.f32 0.0, %v216
      %v218 = vpop.f32.mrb[0].mxu0
      %219 = vdwg.mxu0
      %vm220 = vcmask 80896
      %v221 = vsel %vm220, %v217, -inf
      %v222 = vrot.slane %v221, 4
      %v223 = vmax.f32 %v221, %v222
      %v224 = vrot.slane %v223, 2
      %v225 = vmax.f32 %v223, %v224
      %v226 = vrot.slane %v225, 1
      %v227 = vmax.f32 %v225, %v226
      %v228 = vsub.f32 %v217, %v227
      %v229 = vmul.f32 %v228, 1.442695
      %v230 = vpow.pop %v229
      %v231 = vsel %vm220, %v230, 0.0
      %v232 = vrot.slane %v231, 4
      %v233 = vadd.f32 %v231, %v232
      %v234 = vrot.slane %v233, 2
      %v235 = vadd.f32 %v233, %v234
      %v236 = vrot.slane %v235, 1
      %v237 = vadd.f32 %v235, %v236
      %v238 = vrcp.pop %v237
      %v239 = vmul.f32 %v230, %v238
      %240 = vxpose.xlu0.b32.start [1/16] %v239, 128
      %241 = vxpose.xlu0.b32.cont [2/16] 0.0, 128
      %242 = vxpose.xlu0.b32.cont [3/16] 0.0, 128
      %243 = vxpose.xlu0.b32.cont [4/16] 0.0, 128
      %244 = vxpose.xlu0.b32.cont [5/16] 0.0, 128
      %245 = vxpose.xlu0.b32.cont [6/16] 0.0, 128
      %246 = vxpose.xlu0.b32.cont [7/16] 0.0, 128
      %247 = vxpose.xlu0.b32.cont [8/16] 0.0, 128
      %248 = vxpose.xlu0.b32.cont [9/16] 0.0, 128
      %249 = vxpose.xlu0.b32.cont [10/16] 0.0, 128
      %250 = vxpose.xlu0.b32.cont [11/16] 0.0, 128
      %251 = vxpose.xlu0.b32.cont [12/16] 0.0, 128
      %252 = vxpose.xlu0.b32.cont [13/16] 0.0, 128
      %253 = vxpose.xlu0.b32.cont [14/16] 0.0, 128
      %254 = vxpose.xlu0.b32.cont [15/16] 0.0, 128
      %255 = vxpose.xlu0.b32.end [16/16] 0.0, 128
      %v256 = vpop.trf.xlu0
      %v257 = vpop.trf.xlu0
      %v258 = vpop.trf.xlu0
      %v259 = vpop.trf.xlu0
      %v260 = vpop.trf.xlu0
      %v261 = vpop.trf.xlu0
      %v262 = vpop.trf.xlu0
      %v263 = vpop.trf.xlu0
      %v264 = vpop.trf.xlu0
      %v265 = vpop.trf.xlu0
      %v266 = vpop.trf.xlu0
      %v267 = vpop.trf.xlu0
      %v268 = vpop.trf.xlu0
      %v269 = vpop.trf.xlu0
      %v270 = vpop.trf.xlu0
      %v271 = vpop.trf.xlu0
      %vm272 = vcmask 64512
      %v274 = vsel %vm272, %v256, 0
      %v277 = vsel %vm272, %v257, 0
      %279 = vmatprep.subr.mxu0 0.0
      %280 = vmatpush1.msra.mxu0 %v141
      %281 = vmatprep.subr.mxu0 0.0
      %282 = vmatpush1.msra.mxu0 0.0
      %283 = vmatprep.subr.mxu0 0.0
      %284 = vmatpush1.msra.mxu0 0.0
      %285 = vmatprep.subr.mxu0 0.0
      %286 = vmatpush1.msra.mxu0 0.0
      %287 = vmatprep.subr.mxu0 0.0
      %288 = vmatpush1.msra.mxu0 0.0
      %289 = vmatprep.subr.mxu0 0.0
      %290 = vmatpush1.msra.mxu0 0.0
      %291 = vmatprep.subr.mxu0 0.0
      %292 = vmatpush1.msra.mxu0 0.0
      %293 = vmatprep.subr.mxu0 0.0
      %294 = vmatpush1.msra.mxu0 0.0
      %295 = vmatprep.subr.mxu0 0.0
      %296 = vmatpush1.msra.mxu0 0.0
      %297 = vmatprep.subr.mxu0 0.0
      %298 = vmatpush1.msra.mxu0 0.0
      %299 = vmatprep.subr.mxu0 0.0
      %300 = vmatpush1.msra.mxu0 0.0
      %301 = vmatprep.subr.mxu0 0.0
      %302 = vmatpush1.msra.mxu0 0.0
      %303 = vmatprep.subr.mxu0 0.0
      %304 = vmatpush1.msra.mxu0 0.0
      %305 = vmatprep.subr.mxu0 0.0
      %306 = vmatpush1.msra.mxu0 0.0
      %307 = vmatprep.subr.mxu0 0.0
      %308 = vmatpush1.msra.mxu0 0.0
      %309 = vmatprep.subr.mxu0 0.0
      %310 = vmatpush1.msra.mxu0 0.0
      %311 = vmatprep.subr.mxu0 0.0
      %312 = vmatpush1.msra.mxu0 0.0
      %313 = vmatprep.subr.mxu0 0.0
      %314 = vmatpush1.msra.mxu0 0.0
      %315 = vmatprep.subr.mxu0 0.0
      %316 = vmatpush1.msra.mxu0 0.0
      %317 = vmatprep.subr.mxu0 0.0
      %318 = vmatpush1.msra.mxu0 0.0
      %319 = vmatprep.subr.mxu0 0.0
      %320 = vmatpush1.msra.mxu0 0.0
      %321 = vmatprep.subr.mxu0 0.0
      %322 = vmatpush1.msra.mxu0 0.0
      %323 = vmatprep.subr.mxu0 0.0
      %324 = vmatpush1.msra.mxu0 0.0
      %325 = vmatprep.subr.mxu0 0.0
      %326 = vmatpush1.msra.mxu0 0.0
      %327 = vmatprep.subr.mxu0 0.0
      %328 = vmatpush1.msra.mxu0 0.0
      %329 = vmatprep.subr.mxu0 0.0
      %330 = vmatpush1.msra.mxu0 0.0
      %331 = vmatprep.subr.mxu0 0.0
      %332 = vmatpush1.msra.mxu0 0.0
      %333 = vmatprep.subr.mxu0 0.0
      %334 = vmatpush1.msra.mxu0 0.0
      %335 = vmatprep.subr.mxu0 0.0
      %336 = vmatpush1.msra.mxu0 0.0
      %337 = vmatprep.subr.mxu0 0.0
      %338 = vmatpush1.msra.mxu0 0.0
      %339 = vmatprep.subr.mxu0 0.0
      %340 = vmatpush1.msra.mxu0 0.0
      %341 = vmatprep.subr.mxu0 0.0
      %342 = vmatpush1.msra.mxu0 0.0
      %343 = vmatprep.mubr.f32.mxu0 0.0
      %344 = vmatmul.mubr.f32.gmra.mrb[0].mxu0 %v274
      %v345 = vpop.f32.mrb[0].mxu0
      %v346 = vadd.f32 0.0, %v345
      %v347 = vpop.f32.mrb[0].mxu0
      %348 = vmatprep.mubr.f32.mxu0 0.0
      %349 = vmatmul.mubr.f32.gmra.mrb[0].mxu0 %v277
      %v350 = vpop.f32.mrb[0].mxu0
      %v351 = vadd.f32 0.0, %v350
      %v352 = vpop.f32.mrb[0].mxu0
      %353 = vdwg.mxu0
      %354 = vst.msk [vmem:[%s140] sm:$0xff] %vm146, %v346
      %vm355 = vcmask 254976
      %356 = vst.msk [vmem:[%s140 + $0x8] sm:$0x3] %vm355, %v351
      %p357 = scmp.lt.s32.totalorder %s13, 1
      %s358 = scalar_select %p357, %s13, 1
      %s359 = smul.addr %s358, 2
      %s360 = smul.addr %s359, 8
      %s361 = scalar_lea.vmem %s2, %s360
      // Predicated region
      $region29: #{tpu_custom_call.1} parent=27 // pred_check
        %p362 = pneg %p78
      $region30: #{tpu_custom_call.1} parent=27 // pred_check_branch
        %364 = sbr.rel (%p362) target = $region32
      $region31: #{tpu_custom_call.1} parent=27 // pred_region
        _
      $region32: #{tpu_custom_call.1} parent=27 // pred_fallthru
        _
    $region28: #{tpu_custom_call.1} parent=5 // pred_fallthru
      _
    %p365 = scmp.le.s32.totalorder 2, %s8
    // Predicated region
    $region33: #{tpu_custom_call.1} parent=5 // pred_check
      %p366 = pneg %p365
    $region34: #{tpu_custom_call.1} parent=5 // pred_check_branch
      %368 = sbr.rel (%p366) target = $region36
    $region35: #{tpu_custom_call.1} parent=5 // pred_region
      %s369 = ssub.s32 %s8, 2
      // Predicated region
      $region37: #{tpu_custom_call.1} parent=35 // pred_check
        %p370 = pneg %p84
      $region38: #{tpu_custom_call.1} parent=35 // pred_check_branch
        %372 = sbr.rel (%p370) target = $region40
      $region39: #{tpu_custom_call.1} parent=35 // pred_region
        %p373 = scmp.lt.s32.totalorder %s14, 1
        %s374 = scalar_select %p373, %s14, 1
        %s375 = smul.addr %s374, 2
        %s376 = smul.addr %s375, 8
        %s377 = scalar_lea.vmem %s2, %s376
      $region40: #{tpu_custom_call.1} parent=35 // pred_fallthru
        _
    $region36: #{tpu_custom_call.1} parent=5 // pred_fallthru
      _
  $region6: #{tpu_custom_call.1} parent=0 // loop_footer
    %s12 = sadd.s32 1, %s8
  $region7: #{tpu_custom_call.1} parent=0 // loop_footer_branch
    %7 = sbr.rel target = $region3
  $region8: #{tpu_custom_call.1} parent=0 // loop_exit
    _

</llo_original>
